<compile_context>
chip_gen: v6e
topology: v6e:2x2x1
jax: 0.10.0
libtpu: 0.0.40
codegen_flags: <defaults>
</compile_context>

<pallas_src>
import jax
import jax.numpy as jnp
from jax import lax
from jax.experimental import pallas as pl
from jax.experimental.pallas import tpu as pltpu


# ---------------------------------------------------------------------------
# Stage 1: fused 1x1-conv projections  kv = [Wk; Wv] @ x,  q = Wq @ x
# ---------------------------------------------------------------------------
def _proj_kernel(x_ref, wkv_ref, bkv_ref, wq_ref, bq_ref, kv_out_ref, q_out_ref):
    x = x_ref[0]                                                   # (C, tn) bf16
    kv = jnp.dot(wkv_ref[...], x,
                 preferred_element_type=jnp.float32) + bkv_ref[...]   # (Ckv, tn)
    q = jnp.dot(wq_ref[...], x,
                preferred_element_type=jnp.float32) + bq_ref[...]      # (Cq_pad, tn)
    kv_out_ref[0] = kv.astype(kv_out_ref.dtype)
    q_out_ref[0] = q.astype(q_out_ref.dtype)


# ---------------------------------------------------------------------------
# Stage 2: flash attention over pre-projected q / [k; v] + gamma-residual
# ---------------------------------------------------------------------------
def _flash_attn_kernel(q_ref, kv_ref, xres_ref, gamma_ref, o_ref,
                       m_s, l_s, acc_s):
    ki = pl.program_id(2)
    nk = pl.num_programs(2)
    cq_pad = q_ref.shape[1]

    @pl.when(ki == 0)
    def _init():
        m_s[...] = jnp.full(m_s.shape, -jnp.inf, dtype=jnp.float32)
        l_s[...] = jnp.zeros(l_s.shape, dtype=jnp.float32)
        acc_s[...] = jnp.zeros(acc_s.shape, dtype=jnp.float32)

    q = q_ref[0]                           # (Cq_pad, tq)  bf16
    k = kv_ref[0, :cq_pad, :]              # (Cq_pad, tkv) bf16 (sublane-aligned slice)
    v = kv_ref[0, cq_pad:, :]              # (C,     tkv)  bf16

    # s[j, i] = sum_c k[c, j] * q[c, i]  -> (tkv, tq).  bf16 MXU, f32 acc,
    # no explicit transpose (contract dim 0 of k with dim 0 of q).
    s = lax.dot_general(k, q, (((0,), (0,)), ((), ())),
                        preferred_element_type=jnp.float32)

    # Online softmax over the kv (sublane) axis, all elementwise math in f32.
    m_prev = m_s[...]                                              # (1, tq)
    m_new = jnp.maximum(m_prev, jnp.max(s, axis=0, keepdims=True))
    alpha = jnp.exp(m_prev - m_new)                                # (1, tq)
    p = jnp.exp(s - m_new)                                         # (tkv, tq) f32
    l_s[...] = alpha * l_s[...] + jnp.sum(p, axis=0, keepdims=True)
    acc_s[...] = alpha * acc_s[...] + jnp.dot(
        v, p.astype(v.dtype), preferred_element_type=jnp.float32)  # (C, tq)
    m_s[...] = m_new

    @pl.when(ki == nk - 1)
    def _finalize():
        out = gamma_ref[0, 0] * (acc_s[...] / l_s[...]) + xres_ref[0]
        o_ref[0] = out.astype(o_ref.dtype)


# ---------------------------------------------------------------------------
# Host-side wrapper
# ---------------------------------------------------------------------------
def _round_up(x, m):
    return ((x + m - 1) // m) * m


def _pick_tile(n, want):
    """Largest multiple of 128 <= want that divides n (n must be % 128 == 0)."""
    want = max(128, (want // 128) * 128)
    t = min(want, n)
    while n % t != 0:
        t -= 128
    return t


def attention_block(x_nchw, wq, bq, wk, bk, wv, bv, gamma, *,
                    block_q=512, block_kv=512, block_n=512,
                    compute_dtype=jnp.bfloat16):
    """x_nchw: (B, C, H, W) f32. wq/wk: (C//8, C), wv: (C, C), 1-D biases, scalar gamma."""
    B, C, H, W = x_nchw.shape
    N = H * W
    Cq = wq.shape[0]
    if N % 128 != 0:
        # TODO(synk): pad + mask the spatial axis when H*W is not a multiple of 128.
        raise ValueError("attention_block requires H*W to be a multiple of 128")

    itemsize = jnp.dtype(compute_dtype).itemsize
    sub_pack = 8 * (4 // itemsize)            # sublane packing: 16 rows for bf16
    Cq_pad = _round_up(Cq, sub_pack)
    Ckv = Cq_pad + C                          # [k_padded; v] rows

    # NCHW -> (B, C, N): pure reshape, spatial index on the lane axis everywhere.
    x = x_nchw.reshape(B, C, N)
    x_c = x.astype(compute_dtype)
    x_f32 = x.astype(jnp.float32)             # f32 residual input

    # Zero-pad Wq / Wk rows to the sublane tile (padded q/k rows are exactly 0,
    # contributing nothing to the score contraction; keeps all slices aligned).
    def pad_rows(w, b):
        p = Cq_pad - w.shape[0]
        return jnp.pad(w, ((0, p), (0, 0))), jnp.pad(b, (0, p))

    wq_p, bq_p = pad_rows(wq, bq)
    wk_p, bk_p = pad_rows(wk, bk)

    wkv = jnp.concatenate([wk_p, wv], axis=0).astype(compute_dtype)        # (Ckv, C)
    bkv = jnp.concatenate([bk_p, bv], axis=0).astype(jnp.float32).reshape(Ckv, 1)
    wq_c = wq_p.astype(compute_dtype)                                      # (Cq_pad, C)
    bq_c = bq_p.astype(jnp.float32).reshape(Cq_pad, 1)
    gamma_c = jnp.asarray(gamma, jnp.float32).reshape(1, 1)

    # ---------------- stage 1: projections, one pass over x ----------------
    tn = _pick_tile(N, block_n)
    nn = N // tn
    kv_proj, q_proj = pl.pallas_call(
        _proj_kernel,
        out_shape=(jax.ShapeDtypeStruct((B, Ckv, N), compute_dtype),
                   jax.ShapeDtypeStruct((B, Cq_pad, N), compute_dtype)),
        grid_spec=pltpu.PrefetchScalarGridSpec(
            num_scalar_prefetch=0,
            grid=(B, nn),
            in_specs=[
                pl.BlockSpec((1, C, tn), lambda b, n: (b, 0, n)),       # x (bf16)
                pl.BlockSpec((Ckv, C), lambda b, n: (0, 0)),            # [Wk; Wv]
                pl.BlockSpec((Ckv, 1), lambda b, n: (0, 0)),            # [bk; bv]
                pl.BlockSpec((Cq_pad, C), lambda b, n: (0, 0)),         # Wq
                pl.BlockSpec((Cq_pad, 1), lambda b, n: (0, 0)),         # bq
            ],
            out_specs=(pl.BlockSpec((1, Ckv, tn), lambda b, n: (b, 0, n)),
                       pl.BlockSpec((1, Cq_pad, tn), lambda b, n: (b, 0, n))),
        ),
        compiler_params=pltpu.CompilerParams(
            dimension_semantics=("parallel", "parallel")),
        cost_estimate=pl.CostEstimate(
            flops=int(2 * B * N * C * (Ckv + Cq_pad)),
            transcendentals=0,
            bytes_accessed=int(B * N * (C + Ckv + Cq_pad) * itemsize
                               + (Ckv + Cq_pad) * C * itemsize)),
    )(x_c, wkv, bkv, wq_c, bq_c)

    # ---------------- stage 2: flash attention + residual ------------------
    tq = _pick_tile(N, block_q)
    tkv = _pick_tile(N, block_kv)
    nq, nkv = N // tq, N // tkv

    cost = pl.CostEstimate(
        flops=int(B * (2 * N * N * Cq_pad + 2 * N * N * C)),
        transcendentals=int(B * N * N),
        bytes_accessed=int(B * (N * Cq_pad * itemsize        # q tiles
                                + nq * N * Ckv * itemsize    # kv tiles (per q tile)
                                + N * C * 4                  # f32 residual x
                                + N * C * 4)),               # f32 output
    )

    out = pl.pallas_call(
        _flash_attn_kernel,
        out_shape=jax.ShapeDtypeStruct((B, C, N), jnp.float32),
        grid_spec=pltpu.PrefetchScalarGridSpec(
            num_scalar_prefetch=0,
            grid=(B, nq, nkv),
            in_specs=[
                pl.BlockSpec((1, Cq_pad, tq), lambda b, qi, ki: (b, 0, qi)),  # q
                pl.BlockSpec((1, Ckv, tkv), lambda b, qi, ki: (b, 0, ki)),    # [k; v]
                pl.BlockSpec((1, C, tq), lambda b, qi, ki: (b, 0, qi)),       # x (f32 residual)
                pl.BlockSpec(memory_space=pltpu.MemorySpace.SMEM),            # gamma
            ],
            out_specs=pl.BlockSpec((1, C, tq), lambda b, qi, ki: (b, 0, qi)),
            scratch_shapes=[
                pltpu.VMEM((1, tq), jnp.float32),    # running max
                pltpu.VMEM((1, tq), jnp.float32),    # running denom
                pltpu.VMEM((C, tq), jnp.float32),    # output accumulator
            ],
        ),
        compiler_params=pltpu.CompilerParams(
            dimension_semantics=("parallel", "parallel", "arbitrary"),
            vmem_limit_bytes=48 * 1024 * 1024,
        ),
        cost_estimate=cost,
    )(q_proj, kv_proj, x_f32, gamma_c)

    return out.reshape(B, C, H, W)


# ---------------------------------------------------------------------------
# Plain-JAX reference (mirrors the kernel's bf16 rounding of the matmul
# operands / stage-1 outputs, but keeps the f32 residual like PyTorch).
# ---------------------------------------------------------------------------
def reference(x, wq, bq, wk, bk, wv, bv, gamma, compute_dtype=jnp.bfloat16):
    B, C, H, W = x.shape
    N = H * W
    r = lambda a: a.astype(compute_dtype).astype(jnp.float32)
    xf = r(x).reshape(B, C, N)
    q = r(jnp.einsum('oc,bcn->bon', r(wq), xf) + bq[None, :, None])
    k = r(jnp.einsum('oc,bcn->bon', r(wk), xf) + bk[None, :, None])
    v = r(jnp.einsum('oc,bcn->bon', r(wv), xf) + bv[None, :, None])
    s = jnp.einsum('bci,bcj->bij', q, k)
    attn = jax.nn.softmax(s, axis=-1)
    out = jnp.einsum('bcj,bij->bci', v, attn)
    return gamma * out.reshape(B, C, H, W) + x.astype(jnp.float32)


if __name__ == "__main__":
    B, C, H, W = 2, 16, 16, 16          # N = 256 -> 2 q-tiles x 2 kv-tiles of 128
    Cq = C // 8

    key = jax.random.PRNGKey(0)
    kx, kwq, kbq, kwk, kbk, kwv, kbv = jax.random.split(key, 7)

    x = jax.random.normal(kx, (B, C, H, W), dtype=jnp.float32)
    wq = 0.1 * jax.random.normal(kwq, (Cq, C), dtype=jnp.float32)
    bq = 0.1 * jax.random.normal(kbq, (Cq,), dtype=jnp.float32)
    wk = 0.1 * jax.random.normal(kwk, (Cq, C), dtype=jnp.float32)
    bk = 0.1 * jax.random.normal(kbk, (Cq,), dtype=jnp.float32)
    wv = 0.1 * jax.random.normal(kwv, (C, C), dtype=jnp.float32)
    bv = 0.1 * jax.random.normal(kbv, (C,), dtype=jnp.float32)
    # PyTorch inits gamma to 0 (output == x); use a nonzero value so the
    # attention path is actually exercised and verified.
    gamma = jnp.array(0.7, dtype=jnp.float32)

    # Small tiles so the online-softmax path runs across multiple kv tiles.
    y = attention_block(x, wq, bq, wk, bk, wv, bv, gamma,
                        block_q=128, block_kv=128)
    y = jax.block_until_ready(y)

    y_ref = reference(x, wq, bq, wk, bk, wv, bv, gamma)

    assert y.shape == (B, C, H, W)
    max_err = float(jnp.max(jnp.abs(y - y_ref)))
    assert jnp.allclose(y, y_ref, atol=2e-2, rtol=2e-2), max_err

    print("KERNEL_OK")
</pallas_src>

<mosaic_0001>
module attributes {stable_mosaic.version = 11 : i64} {
  func.func @_proj_kernel(%arg0: i32, %arg1: i32, %arg2: memref<1x16x256xbf16, #tpu.memory_space<vmem>>, %arg3: memref<32x16xbf16, #tpu.memory_space<vmem>>, %arg4: memref<32x1xf32, #tpu.memory_space<vmem>>, %arg5: memref<16x16xbf16, #tpu.memory_space<vmem>>, %arg6: memref<16x1xf32, #tpu.memory_space<vmem>>, %arg7: memref<1x32x256xbf16, #tpu.memory_space<vmem>>, %arg8: memref<1x16x256xbf16, #tpu.memory_space<vmem>>) attributes {dimension_semantics = [#tpu.dimension_semantics<parallel>, #tpu.dimension_semantics<parallel>], iteration_bounds = array<i64: 2, 1>, scalar_prefetch = 0 : i64, scratch_operands = 0 : i64, tpu.core_type = #tpu.core_type<tc>, window_params = [{transform_indices = @transform_0, window_bounds = array<i64: 1, 16, 256>}, {pipeline_mode = #tpu.pipeline_mode<synchronous>, transform_indices = @transform_1, window_bounds = array<i64: 32, 16>}, {pipeline_mode = #tpu.pipeline_mode<synchronous>, transform_indices = @transform_2, window_bounds = array<i64: 32, 1>}, {pipeline_mode = #tpu.pipeline_mode<synchronous>, transform_indices = @transform_3, window_bounds = array<i64: 16, 16>}, {pipeline_mode = #tpu.pipeline_mode<synchronous>, transform_indices = @transform_4, window_bounds = array<i64: 16, 1>}, {transform_indices = @transform_5, window_bounds = array<i64: 1, 32, 256>}, {transform_indices = @transform_6, window_bounds = array<i64: 1, 16, 256>}]} {
    %c0 = arith.constant 0 : index
    %c0_0 = arith.constant 0 : index
    %c0_1 = arith.constant 0 : index
    %0 = vector.load %arg2[%c0, %c0_0, %c0_1] : memref<1x16x256xbf16, #tpu.memory_space<vmem>>, vector<1x16x256xbf16>
    %1 = vector.shape_cast %0 : vector<1x16x256xbf16> to vector<16x256xbf16>
    %c0_2 = arith.constant 0 : index
    %c0_3 = arith.constant 0 : index
    %2 = vector.load %arg3[%c0_2, %c0_3] : memref<32x16xbf16, #tpu.memory_space<vmem>>, vector<32x16xbf16>
    %cst = arith.constant dense<0.000000e+00> : vector<32x256xf32>
    %3 = tpu.matmul %2, %1, %cst {dimension_numbers = #tpu.dot_dimension_numbers<[1], [0], [0], [1], [0, 0, 1, 1], [], []>} : vector<32x16xbf16>, vector<16x256xbf16>, vector<32x256xf32> -> vector<32x256xf32>
    %c0_4 = arith.constant 0 : index
    %c0_5 = arith.constant 0 : index
    %4 = vector.load %arg4[%c0_4, %c0_5] : memref<32x1xf32, #tpu.memory_space<vmem>>, vector<32x1xf32>
    %5 = vector.broadcast %4 : vector<32x1xf32> to vector<32x256xf32>
    %6 = arith.addf %3, %5 : vector<32x256xf32>
    %c0_6 = arith.constant 0 : index
    %c0_7 = arith.constant 0 : index
    %7 = vector.load %arg5[%c0_6, %c0_7] : memref<16x16xbf16, #tpu.memory_space<vmem>>, vector<16x16xbf16>
    %cst_8 = arith.constant dense<0.000000e+00> : vector<16x256xf32>
    %8 = tpu.matmul %7, %1, %cst_8 {dimension_numbers = #tpu.dot_dimension_numbers<[1], [0], [0], [1], [0, 0, 1, 1], [], []>} : vector<16x16xbf16>, vector<16x256xbf16>, vector<16x256xf32> -> vector<16x256xf32>
    %c0_9 = arith.constant 0 : index
    %c0_10 = arith.constant 0 : index
    %9 = vector.load %arg6[%c0_9, %c0_10] : memref<16x1xf32, #tpu.memory_space<vmem>>, vector<16x1xf32>
    %10 = vector.broadcast %9 : vector<16x1xf32> to vector<16x256xf32>
    %11 = arith.addf %8, %10 : vector<16x256xf32>
    %12 = arith.truncf %6 : vector<32x256xf32> to vector<32x256xbf16>
    %c0_11 = arith.constant 0 : index
    %c0_12 = arith.constant 0 : index
    %c0_13 = arith.constant 0 : index
    %13 = vector.load %arg7[%c0_11, %c0_12, %c0_13] : memref<1x32x256xbf16, #tpu.memory_space<vmem>>, vector<1x32x256xbf16>
    %14 = vector.shape_cast %13 : vector<1x32x256xbf16> to vector<32x256xbf16>
    %15 = vector.shape_cast %12 : vector<32x256xbf16> to vector<1x32x256xbf16>
    tpu.vector_store %arg7[%c0_11, %c0_12, %c0_13], %15 {strides = array<i32>} : memref<1x32x256xbf16, #tpu.memory_space<vmem>>, vector<1x32x256xbf16>,
    %16 = arith.truncf %11 : vector<16x256xf32> to vector<16x256xbf16>
    %c0_14 = arith.constant 0 : index
    %c0_15 = arith.constant 0 : index
    %c0_16 = arith.constant 0 : index
    %17 = vector.load %arg8[%c0_14, %c0_15, %c0_16] : memref<1x16x256xbf16, #tpu.memory_space<vmem>>, vector<1x16x256xbf16>
    %18 = vector.shape_cast %17 : vector<1x16x256xbf16> to vector<16x256xbf16>
    %19 = vector.shape_cast %16 : vector<16x256xbf16> to vector<1x16x256xbf16>
    tpu.vector_store %arg8[%c0_14, %c0_15, %c0_16], %19 {strides = array<i32>} : memref<1x16x256xbf16, #tpu.memory_space<vmem>>, vector<1x16x256xbf16>,
    return
  }
  func.func @transform_0(%arg0: i32, %arg1: i32) -> (i32, i32, i32) {
    %c0_i32 = arith.constant 0 : i32
    %c0_i32_0 = arith.constant 0 : i32
    return %arg0, %c0_i32, %arg1 : i32, i32, i32
  }
  func.func @transform_1(%arg0: i32, %arg1: i32) -> (i32, i32) {
    %c0_i32 = arith.constant 0 : i32
    %c0_i32_0 = arith.constant 0 : i32
    %c0_i32_1 = arith.constant 0 : i32
    return %c0_i32, %c0_i32_0 : i32, i32
  }
  func.func @transform_2(%arg0: i32, %arg1: i32) -> (i32, i32) {
    %c0_i32 = arith.constant 0 : i32
    %c0_i32_0 = arith.constant 0 : i32
    %c0_i32_1 = arith.constant 0 : i32
    return %c0_i32, %c0_i32_0 : i32, i32
  }
  func.func @transform_3(%arg0: i32, %arg1: i32) -> (i32, i32) {
    %c0_i32 = arith.constant 0 : i32
    %c0_i32_0 = arith.constant 0 : i32
    %c0_i32_1 = arith.constant 0 : i32
    return %c0_i32, %c0_i32_0 : i32, i32
  }
  func.func @transform_4(%arg0: i32, %arg1: i32) -> (i32, i32) {
    %c0_i32 = arith.constant 0 : i32
    %c0_i32_0 = arith.constant 0 : i32
    %c0_i32_1 = arith.constant 0 : i32
    return %c0_i32, %c0_i32_0 : i32, i32
  }
  func.func @transform_5(%arg0: i32, %arg1: i32) -> (i32, i32, i32) {
    %c0_i32 = arith.constant 0 : i32
    %c0_i32_0 = arith.constant 0 : i32
    return %arg0, %c0_i32, %arg1 : i32, i32, i32
  }
  func.func @transform_6(%arg0: i32, %arg1: i32) -> (i32, i32, i32) {
    %c0_i32 = arith.constant 0 : i32
    %c0_i32_0 = arith.constant 0 : i32
    return %arg0, %c0_i32, %arg1 : i32, i32, i32
  }
}

</mosaic_0001>

<llo_original>
// kernel: tpu_custom_call.1
$region0: #{tpu_custom_call.1}
  #allocation0 [shape = 'u32[]', space=smem, size = 0x4, offset = 0x4, fixed_abs, tag = 'smem constant byte address 0x4 - core index']
  #allocation1 [shape = 'u32[144,128]{1,0:T(1,128)}', space=vmem, size = 0x12000, scoped, tag = 'internal scratch']
  %s0 = inlined_call_operand.vmem [shape: bf16[2,16,256], index: 0, kind: input, shape index: {}]
  %s1 = inlined_call_operand.vmem [shape: bf16[32,16], index: 1, kind: input, shape index: {}]
  %s2 = inlined_call_operand.vmem [shape: f32[32,1], index: 2, kind: input, shape index: {}]
  %s3 = inlined_call_operand.vmem [shape: bf16[16,16], index: 3, kind: input, shape index: {}]
  %s4 = inlined_call_operand.vmem [shape: f32[16,1], index: 4, kind: input, shape index: {}]
  %s5 = inlined_call_operand.hbm [shape: bf16[2,32,256], index: 5, kind: output, shape index: {0}]
  %s6 = inlined_call_operand.hbm [shape: bf16[2,16,256], index: 6, kind: output, shape index: {1}]
  %7 = xla_tuple %s5, %s6
  %s8 = sld [smem:[#allocation0]]
  $region61: #{tpu_custom_call.1} parent=0
    _
  %s10 = ssub.s32 1, %s8
  %s11 = scalar_select 0, %s10, %s8
  $region1: #{tpu_custom_call.1} parent=0
    #allocation2 [shape = 'u8[32768]{0}', space=vmem, size = 0x8000, scoped, tag = 'output window, operand 0']
    #allocation3 [shape = 's32[2]{0}', space=sflag, size = 0x8, scoped, tag = 'scoped memory for tpu_custom_call.1']
    #allocation4 [shape = 'u8[16384]{0}', space=vmem, size = 0x4000, scoped, tag = 'output window, operand 1']
    #allocation5 [shape = 's32[2]{0}', space=sflag, size = 0x8, scoped, tag = 'scoped memory for tpu_custom_call.1']
    %12 = vsyncpa [#allocation3], 0
    %s13 = scalar_lea.sflag [#allocation3], 1
    %14 = vsyncpa %s13, 0
    %15 = vsyncpa [#allocation5], 0
    %s16 = scalar_lea.sflag [#allocation5], 1
    %17 = vsyncpa %s16, 0
    loop: start=0, step=1, limit=4
    $region2: #{tpu_custom_call.1} parent=1 // loop_pre_header
      _
    $region3: #{tpu_custom_call.1} parent=1 // loop_header
      %s19 = sphi 0, %s23
      %p20 = scmp.ge.s32.totalorder %s19, 4
      %s26 = sphi 0, %s38
      %s27 = sphi 0, %s34
      %s28 = sphi 0, %s26
      %s29 = sphi 0, %s27
      %s30 = sphi 0, %s28
      %s31 = sphi 0, %s29
      %s43 = sphi 0, %s45
      %s46 = sphi 0, %s43
      %s47 = sphi 0, %s46
      %s63 = sphi 0, %s47
      %s67 = sphi 0, %s67
      %s69 = sphi 0, %s67
      %s70 = sphi 0, %s69
      %s84 = sphi 0, %s70
      %s88 = sphi 0, %s88
      %s90 = sphi 0, %s88
      %s91 = sphi 0, %s90
      %s105 = sphi 0, %s91
      %s109 = sphi 0, %s109
      %s111 = sphi 0, %s109
      %s112 = sphi 0, %s111
      %s126 = sphi 0, %s112
      %s130 = sphi 0, %s130
      %s132 = sphi 0, %s130
      %s133 = sphi 0, %s132
      %s147 = sphi 0, %s133
      %s155 = sphi 0, %s157
      %s158 = sphi 0, %s155
      %s159 = sphi 0, %s158
      %s175 = sphi 0, %s159
      %s183 = sphi 0, %s185
      %s186 = sphi 0, %s183
      %s187 = sphi 0, %s186
      %s203 = sphi 0, %s187
    $region4: #{tpu_custom_call.1} parent=1 // loop_header_branch
      %22 = sbr.rel (%p20) target = $region8
    $region5: #{tpu_custom_call.1} parent=1 // loop_body
      %s24 = ssub.s32 %s19, 1
      %s25 = ssub.s32 %s19, 2
      %s32 = sadd.s32 1, %s27
      %p33 = scmp.ge.s32.totalorder %s32, 1
      %s34 = scalar_select %p33, 0, %s32
      %s35 = sadd.s32 1, %s26
      %s36 = scalar_select %p33, %s35, %s26
      %p37 = scmp.ge.s32.totalorder %s36, 2
      %s38 = scalar_select %p37, 0, %s36
      %s39 = ssub.s32 %s26, %s38
      %s40 = ssub.s32 %s27, %s34
      %s41 = sor.u32 %s39, %s40
      %p42 = scmp.eq.s32.totalorder %s41, 0
      %s44 = sadd.s32 %s43, 1
      %s45 = scalar_select %p42, %s43, %s44
      %p48 = pneg %p42
      %p49 = scmp.eq.s32.totalorder %s19, 1
      %p50 = por %p48, %p49
      %p51 = scmp.ne.s32.totalorder %s43, %s46
      %p52 = scmp.eq.s32.totalorder %s19, 0
      %p53 = por %p51, %p52
      %p54 = scmp.ne.s32.totalorder %s43, %s46
      %p55 = scmp.eq.s32.totalorder %s24, 1
      %p56 = por %p54, %p55
      %p57 = scmp.ne.s32.totalorder %s46, %s47
      %p58 = scmp.eq.s32.totalorder %s24, 0
      %p59 = por %p57, %p58
      %p60 = scmp.ne.s32.totalorder %s46, %s47
      %p61 = scmp.eq.s32.totalorder %s25, 1
      %p62 = por %p60, %p61
      %p64 = scmp.ne.s32.totalorder %s47, %s63
      %p65 = scmp.eq.s32.totalorder %s25, 0
      %p66 = por %p64, %p65
      %s68 = sadd.s32 %s67, 1
      %p71 = scmp.eq.s32.totalorder %s19, 1
      %p72 = scmp.ne.s32.totalorder %s67, %s69
      %p73 = scmp.eq.s32.totalorder %s19, 0
      %p74 = por %p72, %p73
      %p75 = scmp.ne.s32.totalorder %s67, %s69
      %p76 = scmp.eq.s32.totalorder %s24, 1
      %p77 = por %p75, %p76
      %p78 = scmp.ne.s32.totalorder %s69, %s70
      %p79 = scmp.eq.s32.totalorder %s24, 0
      %p80 = por %p78, %p79
      %p81 = scmp.ne.s32.totalorder %s69, %s70
      %p82 = scmp.eq.s32.totalorder %s25, 1
      %p83 = por %p81, %p82
      %p85 = scmp.ne.s32.totalorder %s70, %s84
      %p86 = scmp.eq.s32.totalorder %s25, 0
      %p87 = por %p85, %p86
      %s89 = sadd.s32 %s88, 1
      %p92 = scmp.eq.s32.totalorder %s19, 1
      %p93 = scmp.ne.s32.totalorder %s88, %s90
      %p94 = scmp.eq.s32.totalorder %s19, 0
      %p95 = por %p93, %p94
      %p96 = scmp.ne.s32.totalorder %s88, %s90
      %p97 = scmp.eq.s32.totalorder %s24, 1
      %p98 = por %p96, %p97
      %p99 = scmp.ne.s32.totalorder %s90, %s91
      %p100 = scmp.eq.s32.totalorder %s24, 0
      %p101 = por %p99, %p100
      %p102 = scmp.ne.s32.totalorder %s90, %s91
      %p103 = scmp.eq.s32.totalorder %s25, 1
      %p104 = por %p102, %p103
      %p106 = scmp.ne.s32.totalorder %s91, %s105
      %p107 = scmp.eq.s32.totalorder %s25, 0
      %p108 = por %p106, %p107
      %s110 = sadd.s32 %s109, 1
      %p113 = scmp.eq.s32.totalorder %s19, 1
      %p114 = scmp.ne.s32.totalorder %s109, %s111
      %p115 = scmp.eq.s32.totalorder %s19, 0
      %p116 = por %p114, %p115
      %p117 = scmp.ne.s32.totalorder %s109, %s111
      %p118 = scmp.eq.s32.totalorder %s24, 1
      %p119 = por %p117, %p118
      %p120 = scmp.ne.s32.totalorder %s111, %s112
      %p121 = scmp.eq.s32.totalorder %s24, 0
      %p122 = por %p120, %p121
      %p123 = scmp.ne.s32.totalorder %s111, %s112
      %p124 = scmp.eq.s32.totalorder %s25, 1
      %p125 = por %p123, %p124
      %p127 = scmp.ne.s32.totalorder %s112, %s126
      %p128 = scmp.eq.s32.totalorder %s25, 0
      %p129 = por %p127, %p128
      %s131 = sadd.s32 %s130, 1
      %p134 = scmp.eq.s32.totalorder %s19, 1
      %p135 = scmp.ne.s32.totalorder %s130, %s132
      %p136 = scmp.eq.s32.totalorder %s19, 0
      %p137 = por %p135, %p136
      %p138 = scmp.ne.s32.totalorder %s130, %s132
      %p139 = scmp.eq.s32.totalorder %s24, 1
      %p140 = por %p138, %p139
      %p141 = scmp.ne.s32.totalorder %s132, %s133
      %p142 = scmp.eq.s32.totalorder %s24, 0
      %p143 = por %p141, %p142
      %p144 = scmp.ne.s32.totalorder %s132, %s133
      %p145 = scmp.eq.s32.totalorder %s25, 1
      %p146 = por %p144, %p145
      %p148 = scmp.ne.s32.totalorder %s133, %s147
      %p149 = scmp.eq.s32.totalorder %s25, 0
      %p150 = por %p148, %p149
      %s151 = ssub.s32 %s26, %s38
      %s152 = ssub.s32 %s27, %s34
      %s153 = sor.u32 %s151, %s152
      %p154 = scmp.eq.s32.totalorder %s153, 0
      %s156 = sadd.s32 %s155, 1
      %s157 = scalar_select %p154, %s155, %s156
      %p160 = pneg %p154
      %p161 = scmp.eq.s32.totalorder %s19, 1
      %p162 = por %p160, %p161
      %p163 = scmp.ne.s32.totalorder %s155, %s158
      %p164 = scmp.eq.s32.totalorder %s19, 0
      %p165 = por %p163, %p164
      %p166 = scmp.ne.s32.totalorder %s155, %s158
      %p167 = scmp.eq.s32.totalorder %s24, 1
      %p168 = por %p166, %p167
      %p169 = scmp.ne.s32.totalorder %s158, %s159
      %p170 = scmp.eq.s32.totalorder %s24, 0
      %p171 = por %p169, %p170
      %p172 = scmp.ne.s32.totalorder %s158, %s159
      %p173 = scmp.eq.s32.totalorder %s25, 1
      %p174 = por %p172, %p173
      %p176 = scmp.ne.s32.totalorder %s159, %s175
      %p177 = scmp.eq.s32.totalorder %s25, 0
      %p178 = por %p176, %p177
      %s179 = ssub.s32 %s26, %s38
      %s180 = ssub.s32 %s27, %s34
      %s181 = sor.u32 %s179, %s180
      %p182 = scmp.eq.s32.totalorder %s181, 0
      %s184 = sadd.s32 %s183, 1
      %s185 = scalar_select %p182, %s183, %s184
      %p188 = pneg %p182
      %p189 = scmp.eq.s32.totalorder %s19, 1
      %p190 = por %p188, %p189
      %p191 = scmp.ne.s32.totalorder %s183, %s186
      %p192 = scmp.eq.s32.totalorder %s19, 0
      %p193 = por %p191, %p192
      %p194 = scmp.ne.s32.totalorder %s183, %s186
      %p195 = scmp.eq.s32.totalorder %s24, 1
      %p196 = por %p194, %p195
      %p197 = scmp.ne.s32.totalorder %s186, %s187
      %p198 = scmp.eq.s32.totalorder %s24, 0
      %p199 = por %p197, %p198
      %p200 = scmp.ne.s32.totalorder %s186, %s187
      %p201 = scmp.eq.s32.totalorder %s25, 1
      %p202 = por %p200, %p201
      %p204 = scmp.ne.s32.totalorder %s187, %s203
      %p205 = scmp.eq.s32.totalorder %s25, 0
      %p206 = por %p204, %p205
      %p207 = scmp.le.s32.totalorder 1, %s19
      %p208 = scmp.lt.s32.totalorder %s19, 3
      %p209 = pnand %p207, %p208
      %p210 = pneg %p209
      // Predicated region
      $region9: #{tpu_custom_call.1} parent=5 // pred_check
        _
      $region10: #{tpu_custom_call.1} parent=5 // pred_check_branch
        %212 = sbr.rel (%p209) target = $region12
      $region11: #{tpu_custom_call.1} parent=5 // pred_region
        %s213 = ssub.s32 %s19, 1
        // Predicated region
        $region13: #{tpu_custom_call.1} parent=11 // pred_check
          %p214 = pneg %p80
        $region14: #{tpu_custom_call.1} parent=11 // pred_check_branch
          %216 = sbr.rel (%p214) target = $region16
        $region15: #{tpu_custom_call.1} parent=11 // pred_region
          _
        $region16: #{tpu_custom_call.1} parent=11 // pred_fallthru
          _
        // Predicated region
        $region17: #{tpu_custom_call.1} parent=11 // pred_check
          %p217 = pneg %p101
        $region18: #{tpu_custom_call.1} parent=11 // pred_check_branch
          %219 = sbr.rel (%p217) target = $region20
        $region19: #{tpu_custom_call.1} parent=11 // pred_region
          _
        $region20: #{tpu_custom_call.1} parent=11 // pred_fallthru
          _
        // Predicated region
        $region21: #{tpu_custom_call.1} parent=11 // pred_check
          %p220 = pneg %p122
        $region22: #{tpu_custom_call.1} parent=11 // pred_check_branch
          %222 = sbr.rel (%p220) target = $region24
        $region23: #{tpu_custom_call.1} parent=11 // pred_region
          _
        $region24: #{tpu_custom_call.1} parent=11 // pred_fallthru
          _
        // Predicated region
        $region25: #{tpu_custom_call.1} parent=11 // pred_check
          %p223 = pneg %p143
        $region26: #{tpu_custom_call.1} parent=11 // pred_check_branch
          %225 = sbr.rel (%p223) target = $region28
        $region27: #{tpu_custom_call.1} parent=11 // pred_region
          _
        $region28: #{tpu_custom_call.1} parent=11 // pred_fallthru
          _
      $region12: #{tpu_custom_call.1} parent=5 // pred_fallthru
        _
      %p226 = scmp.lt.s32.totalorder %s19, 2
      // Predicated region
      $region29: #{tpu_custom_call.1} parent=5 // pred_check
        %p227 = pneg %p226
      $region30: #{tpu_custom_call.1} parent=5 // pred_check_branch
        %229 = sbr.rel (%p227) target = $region32
      $region31: #{tpu_custom_call.1} parent=5 // pred_region
        // Predicated region
        $region33: #{tpu_custom_call.1} parent=31 // pred_check
          %p230 = pneg %p53
        $region34: #{tpu_custom_call.1} parent=31 // pred_check_branch
          %232 = sbr.rel (%p230) target = $region36
        $region35: #{tpu_custom_call.1} parent=31 // pred_region
          %s233 = smul.u32 2, %s27
          %p234 = scmp.lt.s32.totalorder %s26, 1
          %s235 = scalar_select %p234, %s26, 1
          %p236 = scmp.lt.s32.totalorder %s233, 1
          %s237 = scalar_select %p236, %s233, 1
          %s238 = smul.addr %s235, 4
          %s239 = sadd.s32 %s237, %s238
          %s240 = smul.addr %s239, 4
          %s241 = scalar_lea.vmem %s0, %s240
          %s242 = smul.u32 2, %s27
        $region36: #{tpu_custom_call.1} parent=31 // pred_fallthru
          _
      $region32: #{tpu_custom_call.1} parent=5 // pred_fallthru
        _
      %p243 = scmp.le.s32.totalorder 1, %s19
      %p244 = scmp.lt.s32.totalorder %s19, 3
      %p245 = pnand %p243, %p244
      %p246 = pneg %p245
      // Predicated region
      $region37: #{tpu_custom_call.1} parent=5 // pred_check
        _
      $region38: #{tpu_custom_call.1} parent=5 // pred_check_branch
        %248 = sbr.rel (%p245) target = $region40
      $region39: #{tpu_custom_call.1} parent=5 // pred_region
        %s249 = ssub.s32 %s19, 1
        %s250 = smul.u32 2, %s29
        %p251 = scmp.lt.s32.totalorder %s28, 1
        %s252 = scalar_select %p251, %s28, 1
        %p253 = scmp.lt.s32.totalorder %s250, 1
        %s254 = scalar_select %p253, %s250, 1
        %s255 = smul.addr %s252, 4
        %s256 = sadd.s32 %s254, %s255
        %s257 = smul.addr %s256, 4
        %s258 = scalar_lea.vmem %s0, %s257
        %p259 = pneg %p59
        %p260 = pneg %p56
        %p261 = pneg %p80
        %p262 = pneg %p77
        %p263 = pneg %p101
        %p264 = pneg %p98
        %p265 = pneg %p122
        %p266 = pneg %p119
        %p267 = pneg %p143
        %p268 = pneg %p140
        %p269 = pneg %p171
        %p270 = pneg %p168
        %s271 = sand.u32 %s158, 1
        %s272 = scalar_lea.sflag [#allocation3], %s271
        %s273 = sand.u32 %s158, 1
        %s274 = smul.addr %s273, 32
        %s275 = scalar_lea.vmem [#allocation2], %s274
        %p276 = pneg %p199
        %p277 = pneg %p196
        %s278 = sand.u32 %s186, 1
        %s279 = scalar_lea.sflag [#allocation5], %s278
        %s280 = sand.u32 %s186, 1
        %s281 = smul.addr %s280, 16
        %s282 = scalar_lea.vmem [#allocation4], %s281
        %s283 = smul.u32 2, %s29
        %p284 = scmp.lt.s32.totalorder %s28, 1
        %s285 = scalar_select %p284, %s28, 1
        %p286 = scmp.lt.s32.totalorder %s283, 1
        %s287 = scalar_select %p286, %s283, 1
        %s288 = smul.addr %s285, 4
        %s289 = sadd.s32 %s287, %s288
        %s290 = smul.addr %s289, 4
        %s291 = scalar_lea.vmem %s0, %s290
        %s292 = smul.u32 2, %s29
        %s293 = smul.u32 2, %s29
        %s294 = smul.u32 2, %s29
        %v296 = vld [vmem:[%s291] sm:$0xff]
        %v297 = vld [vmem:[%s291 + $0x8] sm:$0xff]
        %v298 = vld [vmem:[%s1] sm:$0xf]
        %v299 = vld [vmem:[%s1 + $0x4] sm:$0xf]
        %v300 = vld [vmem:[%s1 + $0x8] sm:$0xf]
        %v301 = vld [vmem:[%s1 + $0xc] sm:$0xf]
        %v302 = vld [vmem:[%s2] sm:$0xff]
        %v303 = vld [vmem:[%s2 + $0x8] sm:$0xff]
        %v304 = vld [vmem:[%s2 + $0x10] sm:$0xff]
        %v305 = vld [vmem:[%s2 + $0x18] sm:$0xff]
        %307 = vset.pattern.permute.xlu0 0
        %308 = vperm.xlu0 %307, %v302
        %v309 = vpop.permute.xlu0 %308
        %312 = vset.pattern.permute.xlu0 0
        %313 = vperm.xlu0 %312, %v303
        %v314 = vpop.permute.xlu0 %313
        %317 = vset.pattern.permute.xlu0 0
        %318 = vperm.xlu0 %317, %v304
        %v319 = vpop.permute.xlu0 %318
        %322 = vset.pattern.permute.xlu0 0
        %323 = vperm.xlu0 %322, %v305
        %v324 = vpop.permute.xlu0 %323
        %v330 = vunpack.c.l.b16 %v298
        %v331 = vunpack.c.l.b16 %v299
        %v332 = vunpack.c.l.b16 %v300
        %v333 = vunpack.c.l.b16 %v301
        %v334 = vpack.c.b16 %v331, %v330
        %v335 = vpack.c.b16 %v333, %v332
        %v338 = vunpack.c.l.b16 %v296
        %v339 = vunpack.c.h.b16 %v296
        %v340 = vunpack.c.l.b16 %v297
        %v341 = vunpack.c.h.b16 %v297
        %v342 = vpack.c.b16 %v340, %v338
        %v343 = vpack.c.b16 %v341, %v339
        %vm346 = vcmask 130048
        %v348 = vsel %vm346, %v334, 0
        %v351 = vsel %vm346, %v335, 0
        %353 = vmatprep.subr.bf16.mxu0 0
        %354 = vmatpush1.bf16.msra.mxu0 0
        %355 = vmatprep.subr.bf16.mxu0 0
        %356 = vmatpush1.bf16.msra.mxu0 0
        %357 = vmatprep.subr.bf16.mxu0 0
        %358 = vmatpush1.bf16.msra.mxu0 0
        %359 = vmatprep.subr.bf16.mxu0 0
        %360 = vmatpush1.bf16.msra.mxu0 0
        %361 = vmatprep.subr.bf16.mxu0 0
        %362 = vmatpush1.bf16.msra.mxu0 0
        %363 = vmatprep.subr.bf16.mxu0 0
        %364 = vmatpush1.bf16.msra.mxu0 0
        %365 = vmatprep.subr.bf16.mxu0 0
        %366 = vmatpush1.bf16.msra.mxu0 0
        %367 = vmatprep.subr.bf16.mxu0 %v343
        %368 = vmatpush1.bf16.msra.mxu0 %v342
        %369 = vmatprep.subr.bf16.mxu0 0
        %370 = vmatpush2.bf16.msra.mxu0 0
        %371 = vmatprep.subr.bf16.mxu0 0
        %372 = vmatpush2.bf16.msra.mxu0 0
        %373 = vmatprep.subr.bf16.mxu0 0
        %374 = vmatpush2.bf16.msra.mxu0 0
        %375 = vmatprep.subr.bf16.mxu0 0
        %376 = vmatpush2.bf16.msra.mxu0 0
        %377 = vmatprep.subr.bf16.mxu0 0
        %378 = vmatpush2.bf16.msra.mxu0 0
        %379 = vmatprep.subr.bf16.mxu0 0
        %380 = vmatpush2.bf16.msra.mxu0 0
        %381 = vmatprep.subr.bf16.mxu0 0
        %382 = vmatpush2.bf16.msra.mxu0 0
        %383 = vmatprep.subr.bf16.mxu0 0
        %384 = vmatpush2.bf16.msra.mxu0 0
        %385 = vmatprep.mubr.bf16.mxu0 0
        %386 = vmatmul.mubr.bf16.gmra.mxu0 %v348
        %v387 = vpop.f32.mrf.mxu0
        %v388 = vadd.f32 %v309, %v387
        %v389 = vpop.f32.mrf.mxu0
        %v390 = vadd.f32 %v309, %v389
        %v391 = vpop.f32.mrf.mxu0
        %v392 = vadd.f32 %v314, %v391
        %v393 = vpop.f32.mrf.mxu0
        %v394 = vadd.f32 %v314, %v393
        %395 = vmatprep.mubr.bf16.mxu0 0
        %396 = vmatmul.mubr.bf16.gmra.mxu0 %v351
        %v397 = vpop.f32.mrf.mxu0
        %v398 = vadd.f32 %v319, %v397
        %v399 = vpop.f32.mrf.mxu0
        %v400 = vadd.f32 %v319, %v399
        %v401 = vpop.f32.mrf.mxu0
        %v402 = vadd.f32 %v324, %v401
        %v403 = vpop.f32.mrf.mxu0
        %v404 = vadd.f32 %v324, %v403
        %405 = vdwg.mxu0
        %v406 = vld [vmem:[%s3] sm:$0xf]
        %v407 = vld [vmem:[%s3 + $0x4] sm:$0xf]
        %v408 = vld [vmem:[%s4] sm:$0xff]
        %v409 = vld [vmem:[%s4 + $0x8] sm:$0xff]
        %411 = vset.pattern.permute.xlu0 0
        %412 = vperm.xlu0 %411, %v408
        %v413 = vpop.permute.xlu0 %412
        %416 = vset.pattern.permute.xlu0 0
        %417 = vperm.xlu0 %416, %v409
        %v418 = vpop.permute.xlu0 %417
        %v422 = vunpack.c.l.b16 %v406
        %v423 = vunpack.c.l.b16 %v407
        %v424 = vpack.c.b16 %v423, %v422
        %v426 = vsel %vm346, %v424, 0
        %428 = vmatprep.subr.bf16.mxu0 0
        %429 = vmatpush1.bf16.msra.mxu0 0
        %430 = vmatprep.subr.bf16.mxu0 0
        %431 = vmatpush1.bf16.msra.mxu0 0
        %432 = vmatprep.subr.bf16.mxu0 0
        %433 = vmatpush1.bf16.msra.mxu0 0
        %434 = vmatprep.subr.bf16.mxu0 0
        %435 = vmatpush1.bf16.msra.mxu0 0
        %436 = vmatprep.subr.bf16.mxu0 0
        %437 = vmatpush1.bf16.msra.mxu0 0
        %438 = vmatprep.subr.bf16.mxu0 0
        %439 = vmatpush1.bf16.msra.mxu0 0
        %440 = vmatprep.subr.bf16.mxu0 0
        %441 = vmatpush1.bf16.msra.mxu0 0
        %442 = vmatprep.subr.bf16.mxu0 %v343
        %443 = vmatpush1.bf16.msra.mxu0 %v342
        %444 = vmatprep.subr.bf16.mxu0 0
        %445 = vmatpush2.bf16.msra.mxu0 0
        %446 = vmatprep.subr.bf16.mxu0 0
        %447 = vmatpush2.bf16.msra.mxu0 0
        %448 = vmatprep.subr.bf16.mxu0 0
        %449 = vmatpush2.bf16.msra.mxu0 0
        %450 = vmatprep.subr.bf16.mxu0 0
        %451 = vmatpush2.bf16.msra.mxu0 0
        %452 = vmatprep.subr.bf16.mxu0 0
        %453 = vmatpush2.bf16.msra.mxu0 0
        %454 = vmatprep.subr.bf16.mxu0 0
        %455 = vmatpush2.bf16.msra.mxu0 0
        %456 = vmatprep.subr.bf16.mxu0 0
        %457 = vmatpush2.bf16.msra.mxu0 0
        %458 = vmatprep.subr.bf16.mxu0 0
        %459 = vmatpush2.bf16.msra.mxu0 0
        %460 = vmatprep.mubr.bf16.mxu0 0
        %461 = vmatmul.mubr.bf16.gmra.mxu0 %v426
        %v462 = vpop.f32.mrf.mxu0
        %v463 = vadd.f32 %v413, %v462
        %v464 = vpop.f32.mrf.mxu0
        %v465 = vadd.f32 %v413, %v464
        %v466 = vpop.f32.mrf.mxu0
        %v467 = vadd.f32 %v418, %v466
        %v468 = vpop.f32.mrf.mxu0
        %v469 = vadd.f32 %v418, %v468
        %470 = vdwg.mxu0
        %v471 = vpack.c.bf16 %v392, %v388
        %v472 = vpack.c.bf16 %v394, %v390
        %v473 = vpack.c.bf16 %v402, %v398
        %v474 = vpack.c.bf16 %v404, %v400
        %v479 = vunpack.c.l.b16 %v471
        %v480 = vunpack.c.l.b16 %v472
        %v481 = vunpack.c.h.b16 %v471
        %v482 = vunpack.c.h.b16 %v472
        %v483 = vunpack.c.l.b16 %v473
        %v484 = vunpack.c.l.b16 %v474
        %v485 = vunpack.c.h.b16 %v473
        %v486 = vunpack.c.h.b16 %v474
        %v487 = vpack.c.b16 %v480, %v479
        %v488 = vpack.c.b16 %v482, %v481
        %v489 = vpack.c.b16 %v484, %v483
        %v490 = vpack.c.b16 %v486, %v485
        %495 = vst [vmem:[%s275] sm:$0xff] %v487
        %496 = vst [vmem:[%s275 + $0x8] sm:$0xff] %v488
        %497 = vst [vmem:[%s275 + $0x10] sm:$0xff] %v489
        %498 = vst [vmem:[%s275 + $0x18] sm:$0xff] %v490
        %v499 = vpack.c.bf16 %v467, %v463
        %v500 = vpack.c.bf16 %v469, %v465
        %v503 = vunpack.c.l.b16 %v499
        %v504 = vunpack.c.l.b16 %v500
        %v505 = vunpack.c.h.b16 %v499
        %v506 = vunpack.c.h.b16 %v500
        %v507 = vpack.c.b16 %v504, %v503
        %v508 = vpack.c.b16 %v506, %v505
        %511 = vst [vmem:[%s282] sm:$0xff] %v507
        %512 = vst [vmem:[%s282 + $0x8] sm:$0xff] %v508
        %s513 = sand.u32 %s158, 1
        %s514 = scalar_lea.sflag [#allocation3], %s513
        %s515 = sand.u32 %s158, 1
        %s516 = smul.addr %s515, 32
        %s517 = scalar_lea.vmem [#allocation2], %s516
        %s518 = sand.u32 %s186, 1
        %s519 = scalar_lea.sflag [#allocation5], %s518
        %s520 = sand.u32 %s186, 1
        %s521 = smul.addr %s520, 16
        %s522 = scalar_lea.vmem [#allocation4], %s521
        // Predicated region
        $region41: #{tpu_custom_call.1} parent=39 // pred_check
          %p523 = pneg %p168
        $region42: #{tpu_custom_call.1} parent=39 // pred_check_branch
          %525 = sbr.rel (%p523) target = $region44
        $region43: #{tpu_custom_call.1} parent=39 // pred_region
          %s526 = smul.u32 2, %s29
          %s528 = ssub.s32 512, 512
          %529 = vsyncadd %s514, %s528
          %s530 = smul.addr %s28, 8
          %s531 = sadd.s32 %s526, %s530
          %s532 = smul.addr %s531, 64
          %s533 = scalar_lea.hbm %s5, %s532
          %s534 = sshll.u32 %s517, 4
          %s535 = int_to_ptr.vmem [resolvable:$true] %s534
          %540 = dma.vmem_to_hbm [thread:$0]  %s535, 512, %s533, %s514, 128, 128, 8
        $region44: #{tpu_custom_call.1} parent=39 // pred_fallthru
          _
        // Predicated region
        $region45: #{tpu_custom_call.1} parent=39 // pred_check
          %p541 = pneg %p196
        $region46: #{tpu_custom_call.1} parent=39 // pred_check_branch
          %543 = sbr.rel (%p541) target = $region48
        $region47: #{tpu_custom_call.1} parent=39 // pred_region
          %s544 = smul.u32 2, %s29
          %s546 = ssub.s32 256, 256
          %547 = vsyncadd %s519, %s546
          %s548 = smul.addr %s28, 4
          %s549 = sadd.s32 %s544, %s548
          %s550 = smul.addr %s549, 64
          %s551 = scalar_lea.hbm %s6, %s550
          %s552 = sshll.u32 %s522, 4
          %s553 = int_to_ptr.vmem [resolvable:$true] %s552
          %558 = dma.vmem_to_hbm [thread:$0]  %s553, 256, %s551, %s519, 128, 128, 8
        $region48: #{tpu_custom_call.1} parent=39 // pred_fallthru
          _
      $region40: #{tpu_custom_call.1} parent=5 // pred_fallthru
        _
      %p559 = scmp.le.s32.totalorder 2, %s19
      // Predicated region
      $region49: #{tpu_custom_call.1} parent=5 // pred_check
        %p560 = pneg %p559
      $region50: #{tpu_custom_call.1} parent=5 // pred_check_branch
        %562 = sbr.rel (%p560) target = $region52
      $region51: #{tpu_custom_call.1} parent=5 // pred_region
        %s563 = ssub.s32 %s19, 2
        // Predicated region
        $region53: #{tpu_custom_call.1} parent=51 // pred_check
          %p564 = pneg %p174
        $region54: #{tpu_custom_call.1} parent=51 // pred_check_branch
          %566 = sbr.rel (%p564) target = $region56
        $region55: #{tpu_custom_call.1} parent=51 // pred_region
          %s567 = sand.u32 %s159, 1
          %s568 = scalar_lea.sflag [#allocation3], %s567
          %s569 = sand.u32 %s159, 1
          %s570 = smul.addr %s569, 32
          %s571 = scalar_lea.vmem [#allocation2], %s570
          %572 = dma.done %s568, 512
        $region56: #{tpu_custom_call.1} parent=51 // pred_fallthru
          _
        // Predicated region
        $region57: #{tpu_custom_call.1} parent=51 // pred_check
          %p573 = pneg %p202
        $region58: #{tpu_custom_call.1} parent=51 // pred_check_branch
          %575 = sbr.rel (%p573) target = $region60
        $region59: #{tpu_custom_call.1} parent=51 // pred_region
          %s576 = sand.u32 %s187, 1
          %s577 = scalar_lea.sflag [#allocation5], %s576
          %s578 = sand.u32 %s187, 1
          %s579 = smul.addr %s578, 16
          %s580 = scalar_lea.vmem [#allocation4], %s579
          %581 = dma.done %s577, 256
        $region60: #{tpu_custom_call.1} parent=51 // pred_fallthru
          _
      $region52: #{tpu_custom_call.1} parent=5 // pred_fallthru
        _
    $region6: #{tpu_custom_call.1} parent=1 // loop_footer
      %s23 = sadd.s32 1, %s19
    $region7: #{tpu_custom_call.1} parent=1 // loop_footer_branch
      %18 = sbr.rel target = $region3
    $region8: #{tpu_custom_call.1} parent=1 // loop_exit
      _
    %582 = vsyncpa [#allocation3], 1
    %s583 = scalar_lea.sflag [#allocation3], 1
    %584 = vsyncpa %s583, 1
    %585 = vsyncpa [#allocation5], 1
    %s586 = scalar_lea.sflag [#allocation5], 1
    %587 = vsyncpa %s586, 1

</llo_original>
